<compile_context>
chip_gen: v6e
topology: v6e:2x2x1
jax: 0.10.0
libtpu: 0.0.40
codegen_flags: <defaults>
</compile_context>

<pallas_src>
import jax
import jax.numpy as jnp
from jax.experimental import pallas as pl
from jax.experimental.pallas import tpu as pltpu


def _elu(x):
    # ELU(alpha=1), matching F.elu / jax.nn.elu.  Negative branch needs expm1;
    # use expm1(t) = (exp(t) + 1) * tanh(t / 2) (no cancellation near 0) built
    # from exp/tanh which always lower on Mosaic.  Clamping t <= 0 keeps
    # garbage rows of a remainder tile from overflowing exp.
    t = jnp.minimum(x, 0.0)
    neg = (jnp.exp(t) + 1.0) * jnp.tanh(0.5 * t)
    return jnp.where(x > 0.0, x, neg)


def critic_kernel(s_ref, a_ref, w1_ref, b1_ref, w2s_ref, w2a_ref, b2_ref,
                  w3_ref, b3_ref, out_ref):
    s = s_ref[...]                                   # (tb, dim_state)
    a = a_ref[...]                                   # (tb, dim_action)

    # --- layer 1: elu(state @ W1 + b1) -------------------------------------
    h = jnp.dot(s, w1_ref[...], preferred_element_type=jnp.float32)
    h = _elu(h + b1_ref[...])

    # --- layer 2: elu(concat([h, action]) @ W2 + b2) as split matmul --------
    z = jnp.dot(h, w2s_ref[...], preferred_element_type=jnp.float32)
    z = z + jnp.dot(a, w2a_ref[...], preferred_element_type=jnp.float32)
    z = _elu(z + b2_ref[...])

    # --- layer 3: q = w3_row @ z^T + b3 -------------------------------------
    # Emits the tile's q values as a lane-dense (1, tb) row straight off the
    # MXU: dense row stores instead of one masked vst per 8 rows.
    q = jnp.dot(w3_ref[...], z.T, preferred_element_type=jnp.float32)
    out_ref[...] = (q + b3_ref[0, 0]).reshape(out_ref.shape)


def _ceil_div(a, b):
    return -(-a // b)


def _choose_batch_tile(B, block_b):
    """Batch tile: large (amortizes ~0.35 us/grid step), a multiple of 8,
    VMEM-capped, and giving an even step count >= 2 for big batches so the
    'parallel' grid axis keeps both v7x TensorCores busy."""
    block_b = max(8, min(block_b, 8192))             # VMEM cap (lane-padded rows)
    if B <= block_b and B <= 256:
        return B                                     # tiny batch: single tile
    n_steps = max(2, _ceil_div(B, block_b))
    if n_steps % 2:
        n_steps += 1                                 # even step count for megacore
    tb = _ceil_div(B, n_steps)
    tb = _ceil_div(tb, 8) * 8                        # sublane multiple
    return min(tb, B)


def _vmem_limit_bytes(tb, ds, da, h1, h2):
    """Explicit scoped-VMEM budget: double-buffered input tiles plus the
    h / z / z^T intermediates, all lane-padded to 128, plus slack."""
    pad = lambda n: _ceil_div(n, 128) * 128
    per_row = 2 * pad(ds) + 2 * pad(da) + pad(h1) + 2 * pad(h2)
    est = 4 * tb * per_row + (2 << 20)               # + weights/biases/output
    return int(min(40 * 1024 * 1024, max(8 * 1024 * 1024, 2 * est)))


def critic_forward(state, action, params, *, block_b=4096):
    """Batch-tiled Pallas forward pass of the Critic."""
    (w1, b1, w2s, w2a, b2, w3_row, b3) = params
    B, ds = state.shape
    da = action.shape[1]
    h1 = w1.shape[1]
    h2 = w2s.shape[1]

    tb = _choose_batch_tile(B, block_b)
    num_tiles = _ceil_div(B, tb)
    grid = (num_tiles,)

    def const_spec(arr):                             # VMEM-resident across grid
        zeros = (0,) * arr.ndim
        return pl.BlockSpec(arr.shape, lambda i: zeros)

    flops = int(2 * B * (ds * h1 + (h1 + da) * h2 + h2))
    transcendentals = int(2 * B * (h1 + h2))         # exp + tanh in the ELUs
    bytes_accessed = int(4 * (B * (ds + da) + B
                              + w1.size + b1.size + w2s.size + w2a.size
                              + b2.size + w3_row.size + b3.size))

    out = pl.pallas_call(
        critic_kernel,
        out_shape=jax.ShapeDtypeStruct((num_tiles, 1, tb), jnp.float32),
        grid=grid,
        in_specs=[
            pl.BlockSpec((tb, ds), lambda i: (i, 0)),       # state, batch-tiled
            pl.BlockSpec((tb, da), lambda i: (i, 0)),       # action, batch-tiled
            const_spec(w1), const_spec(b1),
            const_spec(w2s), const_spec(w2a), const_spec(b2),
            const_spec(w3_row),
            pl.BlockSpec(memory_space=pltpu.MemorySpace.SMEM),   # b3 scalar
        ],
        out_specs=pl.BlockSpec((1, 1, tb), lambda i: (i, 0, 0)),
        compiler_params=pltpu.CompilerParams(
            dimension_semantics=("parallel",),               # megacore split
            vmem_limit_bytes=_vmem_limit_bytes(tb, ds, da, h1, h2)),
        cost_estimate=pl.CostEstimate(
            flops=flops,
            transcendentals=transcendentals,
            bytes_accessed=bytes_accessed),
    )(state, action, w1, b1, w2s, w2a, b2, w3_row, b3)

    # Flatten the lane-dense tiles back to a (B, 1) column; garbage rows of a
    # remainder tile are sliced away here.
    return out.reshape(num_tiles * tb)[:B].reshape(B, 1)


# ---------------------------------------------------------------------------
# Parameter construction + pure-JAX reference
# ---------------------------------------------------------------------------
def xavier_uniform(key, fan_in, fan_out):
    bound = jnp.sqrt(6.0 / (fan_in + fan_out))
    # stored as (in, out) so kernel does x @ W
    return jax.random.uniform(key, (fan_in, fan_out), jnp.float32, -bound, bound)


def bias_init(key, fan_in, out):
    bound = 1.0 / jnp.sqrt(float(fan_in))
    return jax.random.uniform(key, (1, out), jnp.float32, -bound, bound)


def make_params(key, dim_state, dim_action, h1, h2):
    ks = jax.random.split(key, 6)
    w1 = xavier_uniform(ks[0], dim_state, h1)
    b1 = bias_init(ks[1], dim_state, h1)
    # linear2 input dim is (h1 + dim_action); split into state-part / action-part
    w2_full = xavier_uniform(ks[2], h1 + dim_action, h2)
    w2s = w2_full[:h1, :]
    w2a = w2_full[h1:, :]
    b2 = bias_init(ks[3], h1 + dim_action, h2)
    w3_row = xavier_uniform(ks[4], h2, 1).T          # stored as (1, h2) row
    b3 = bias_init(ks[5], h2, 1)                     # (1, 1) scalar
    return (w1, b1, w2s, w2a, b2, w3_row, b3)


def critic_ref(state, action, params):
    (w1, b1, w2s, w2a, b2, w3_row, b3) = params
    h = jax.nn.elu(state @ w1 + b1)
    x = jnp.concatenate([h, action], axis=1)
    w2 = jnp.concatenate([w2s, w2a], axis=0)
    z = jax.nn.elu(x @ w2 + b2)
    return z @ w3_row.T + b3


if __name__ == "__main__":
    dim_state, dim_action, h1, h2 = 16, 4, 32, 32

    key = jax.random.PRNGKey(0)
    k_s, k_a, k_p, k_s2, k_a2 = jax.random.split(key, 5)
    params = make_params(k_p, dim_state, dim_action, h1, h2)

    # --- small single-tile case ---------------------------------------------
    B = 8
    state = jax.random.normal(k_s, (B, dim_state), jnp.float32)
    action = jax.random.normal(k_a, (B, dim_action), jnp.float32)
    out = jax.block_until_ready(critic_forward(state, action, params))
    ref = critic_ref(state, action, params)
    assert out.shape == (B, 1)
    assert jnp.allclose(out, ref, atol=1e-5, rtol=1e-5)

    # --- multi-tile grid with a remainder block (exercises the batch grid
    #     and the lane-dense output path) ------------------------------------
    B2 = 50
    state2 = jax.random.normal(k_s2, (B2, dim_state), jnp.float32)
    action2 = jax.random.normal(k_a2, (B2, dim_action), jnp.float32)
    out2 = jax.block_until_ready(
        critic_forward(state2, action2, params, block_b=16))
    ref2 = critic_ref(state2, action2, params)
    assert out2.shape == (B2, 1)
    assert jnp.allclose(out2, ref2, atol=1e-5, rtol=1e-5)

    print("KERNEL_OK")
</pallas_src>

<mosaic_0001>
module attributes {stable_mosaic.version = 11 : i64} {
  func.func @critic_kernel(%arg0: i32, %arg1: memref<8x16xf32, #tpu.memory_space<vmem>>, %arg2: memref<8x4xf32, #tpu.memory_space<vmem>>, %arg3: memref<16x32xf32, #tpu.memory_space<vmem>>, %arg4: memref<1x32xf32, #tpu.memory_space<vmem>>, %arg5: memref<32x32xf32, #tpu.memory_space<vmem>>, %arg6: memref<4x32xf32, #tpu.memory_space<vmem>>, %arg7: memref<1x32xf32, #tpu.memory_space<vmem>>, %arg8: memref<1x32xf32, #tpu.memory_space<vmem>>, %arg9: memref<1x1xf32, #tpu.memory_space<smem>>, %arg10: memref<1x1x8xf32, #tpu.memory_space<vmem>>) attributes {dimension_semantics = [#tpu.dimension_semantics<parallel>], iteration_bounds = array<i64: 1>, scalar_prefetch = 0 : i64, scratch_operands = 0 : i64, tpu.core_type = #tpu.core_type<tc>, window_params = [{transform_indices = @transform_0, window_bounds = array<i64: 8, 16>}, {transform_indices = @transform_1, window_bounds = array<i64: 8, 4>}, {pipeline_mode = #tpu.pipeline_mode<synchronous>, transform_indices = @transform_2, window_bounds = array<i64: 16, 32>}, {pipeline_mode = #tpu.pipeline_mode<synchronous>, transform_indices = @transform_3, window_bounds = array<i64: 1, 32>}, {pipeline_mode = #tpu.pipeline_mode<synchronous>, transform_indices = @transform_4, window_bounds = array<i64: 32, 32>}, {pipeline_mode = #tpu.pipeline_mode<synchronous>, transform_indices = @transform_5, window_bounds = array<i64: 4, 32>}, {pipeline_mode = #tpu.pipeline_mode<synchronous>, transform_indices = @transform_6, window_bounds = array<i64: 1, 32>}, {pipeline_mode = #tpu.pipeline_mode<synchronous>, transform_indices = @transform_7, window_bounds = array<i64: 1, 32>}, {transform_indices = @transform_8, window_bounds = array<i64: 1, 1>}, {transform_indices = @transform_9, window_bounds = array<i64: 1, 1, 8>}]} {
    %c0 = arith.constant 0 : index
    %c0_0 = arith.constant 0 : index
    %0 = vector.load %arg1[%c0, %c0_0] : memref<8x16xf32, #tpu.memory_space<vmem>>, vector<8x16xf32>
    %c0_1 = arith.constant 0 : index
    %c0_2 = arith.constant 0 : index
    %1 = vector.load %arg2[%c0_1, %c0_2] : memref<8x4xf32, #tpu.memory_space<vmem>>, vector<8x4xf32>
    %c0_3 = arith.constant 0 : index
    %c0_4 = arith.constant 0 : index
    %2 = vector.load %arg3[%c0_3, %c0_4] : memref<16x32xf32, #tpu.memory_space<vmem>>, vector<16x32xf32>
    %cst = arith.constant dense<0.000000e+00> : vector<8x32xf32>
    %3 = tpu.matmul %0, %2, %cst {dimension_numbers = #tpu.dot_dimension_numbers<[1], [0], [0], [1], [0, 0, 1, 1], [], []>} : vector<8x16xf32>, vector<16x32xf32>, vector<8x32xf32> -> vector<8x32xf32>
    %c0_5 = arith.constant 0 : index
    %c0_6 = arith.constant 0 : index
    %4 = vector.load %arg4[%c0_5, %c0_6] : memref<1x32xf32, #tpu.memory_space<vmem>>, vector<1x32xf32>
    %5 = vector.broadcast %4 : vector<1x32xf32> to vector<8x32xf32>
    %6 = arith.addf %3, %5 : vector<8x32xf32>
    %cst_7 = arith.constant 0.000000e+00 : f32
    %7 = vector.broadcast %cst_7 : f32 to vector<8x32xf32>
    %8 = arith.minimumf %6, %7 : vector<8x32xf32>
    %9 = math.exp %8 : vector<8x32xf32>
    %cst_8 = arith.constant 1.000000e+00 : f32
    %10 = vector.broadcast %cst_8 : f32 to vector<8x32xf32>
    %11 = arith.addf %9, %10 : vector<8x32xf32>
    %cst_9 = arith.constant 5.000000e-01 : f32
    %12 = vector.broadcast %cst_9 : f32 to vector<8x32xf32>
    %13 = arith.mulf %12, %8 : vector<8x32xf32>
    %14 = math.tanh %13 : vector<8x32xf32>
    %15 = arith.mulf %11, %14 : vector<8x32xf32>
    %cst_10 = arith.constant 0.000000e+00 : f32
    %16 = vector.broadcast %cst_10 : f32 to vector<8x32xf32>
    %17 = arith.cmpf ogt, %6, %16 : vector<8x32xf32>
    %18 = arith.select %17, %6, %15 : vector<8x32xi1>, vector<8x32xf32>
    %c0_11 = arith.constant 0 : index
    %c0_12 = arith.constant 0 : index
    %19 = vector.load %arg5[%c0_11, %c0_12] : memref<32x32xf32, #tpu.memory_space<vmem>>, vector<32x32xf32>
    %cst_13 = arith.constant dense<0.000000e+00> : vector<8x32xf32>
    %20 = tpu.matmul %18, %19, %cst_13 {dimension_numbers = #tpu.dot_dimension_numbers<[1], [0], [0], [1], [0, 0, 1, 1], [], []>} : vector<8x32xf32>, vector<32x32xf32>, vector<8x32xf32> -> vector<8x32xf32>
    %c0_14 = arith.constant 0 : index
    %c0_15 = arith.constant 0 : index
    %21 = vector.load %arg6[%c0_14, %c0_15] : memref<4x32xf32, #tpu.memory_space<vmem>>, vector<4x32xf32>
    %cst_16 = arith.constant dense<0.000000e+00> : vector<8x32xf32>
    %22 = tpu.matmul %1, %21, %cst_16 {dimension_numbers = #tpu.dot_dimension_numbers<[1], [0], [0], [1], [0, 0, 1, 1], [], []>} : vector<8x4xf32>, vector<4x32xf32>, vector<8x32xf32> -> vector<8x32xf32>
    %23 = arith.addf %20, %22 : vector<8x32xf32>
    %c0_17 = arith.constant 0 : index
    %c0_18 = arith.constant 0 : index
    %24 = vector.load %arg7[%c0_17, %c0_18] : memref<1x32xf32, #tpu.memory_space<vmem>>, vector<1x32xf32>
    %25 = vector.broadcast %24 : vector<1x32xf32> to vector<8x32xf32>
    %26 = arith.addf %23, %25 : vector<8x32xf32>
    %cst_19 = arith.constant 0.000000e+00 : f32
    %27 = vector.broadcast %cst_19 : f32 to vector<8x32xf32>
    %28 = arith.minimumf %26, %27 : vector<8x32xf32>
    %29 = math.exp %28 : vector<8x32xf32>
    %cst_20 = arith.constant 1.000000e+00 : f32
    %30 = vector.broadcast %cst_20 : f32 to vector<8x32xf32>
    %31 = arith.addf %29, %30 : vector<8x32xf32>
    %cst_21 = arith.constant 5.000000e-01 : f32
    %32 = vector.broadcast %cst_21 : f32 to vector<8x32xf32>
    %33 = arith.mulf %32, %28 : vector<8x32xf32>
    %34 = math.tanh %33 : vector<8x32xf32>
    %35 = arith.mulf %31, %34 : vector<8x32xf32>
    %cst_22 = arith.constant 0.000000e+00 : f32
    %36 = vector.broadcast %cst_22 : f32 to vector<8x32xf32>
    %37 = arith.cmpf ogt, %26, %36 : vector<8x32xf32>
    %38 = arith.select %37, %26, %35 : vector<8x32xi1>, vector<8x32xf32>
    %c0_23 = arith.constant 0 : index
    %c0_24 = arith.constant 0 : index
    %39 = vector.load %arg8[%c0_23, %c0_24] : memref<1x32xf32, #tpu.memory_space<vmem>>, vector<1x32xf32>
    %40 = tpu.transpose %38, [1, 0] : vector<8x32xf32> -> vector<32x8xf32>
    %cst_25 = arith.constant dense<0.000000e+00> : vector<1x8xf32>
    %41 = tpu.matmul %39, %40, %cst_25 {dimension_numbers = #tpu.dot_dimension_numbers<[1], [0], [0], [1], [0, 0, 1, 1], [], []>} : vector<1x32xf32>, vector<32x8xf32>, vector<1x8xf32> -> vector<1x8xf32>
    %c0_26 = arith.constant 0 : index
    %c0_27 = arith.constant 0 : index
    %42 = memref.load %arg9[%c0_26, %c0_27] : memref<1x1xf32, #tpu.memory_space<smem>>
    %43 = vector.broadcast %42 : f32 to vector<1x8xf32>
    %44 = arith.addf %41, %43 : vector<1x8xf32>
    %45 = vector.shape_cast %44 : vector<1x8xf32> to vector<1x1x8xf32>
    %c0_28 = arith.constant 0 : index
    %c0_29 = arith.constant 0 : index
    %c0_30 = arith.constant 0 : index
    %46 = vector.load %arg10[%c0_28, %c0_29, %c0_30] : memref<1x1x8xf32, #tpu.memory_space<vmem>>, vector<1x1x8xf32>
    tpu.vector_store %arg10[%c0_28, %c0_29, %c0_30], %45 {strides = array<i32>} : memref<1x1x8xf32, #tpu.memory_space<vmem>>, vector<1x1x8xf32>,
    return
  }
  func.func @transform_0(%arg0: i32) -> (i32, i32) {
    %c0_i32 = arith.constant 0 : i32
    %c0_i32_0 = arith.constant 0 : i32
    return %arg0, %c0_i32 : i32, i32
  }
  func.func @transform_1(%arg0: i32) -> (i32, i32) {
    %c0_i32 = arith.constant 0 : i32
    %c0_i32_0 = arith.constant 0 : i32
    return %arg0, %c0_i32 : i32, i32
  }
  func.func @transform_2(%arg0: i32) -> (i32, i32) {
    %c0_i32 = arith.constant 0 : i32
    %c0_i32_0 = arith.constant 0 : i32
    %c0_i32_1 = arith.constant 0 : i32
    return %c0_i32, %c0_i32_0 : i32, i32
  }
  func.func @transform_3(%arg0: i32) -> (i32, i32) {
    %c0_i32 = arith.constant 0 : i32
    %c0_i32_0 = arith.constant 0 : i32
    %c0_i32_1 = arith.constant 0 : i32
    return %c0_i32, %c0_i32_0 : i32, i32
  }
  func.func @transform_4(%arg0: i32) -> (i32, i32) {
    %c0_i32 = arith.constant 0 : i32
    %c0_i32_0 = arith.constant 0 : i32
    %c0_i32_1 = arith.constant 0 : i32
    return %c0_i32, %c0_i32_0 : i32, i32
  }
  func.func @transform_5(%arg0: i32) -> (i32, i32) {
    %c0_i32 = arith.constant 0 : i32
    %c0_i32_0 = arith.constant 0 : i32
    %c0_i32_1 = arith.constant 0 : i32
    return %c0_i32, %c0_i32_0 : i32, i32
  }
  func.func @transform_6(%arg0: i32) -> (i32, i32) {
    %c0_i32 = arith.constant 0 : i32
    %c0_i32_0 = arith.constant 0 : i32
    %c0_i32_1 = arith.constant 0 : i32
    return %c0_i32, %c0_i32_0 : i32, i32
  }
  func.func @transform_7(%arg0: i32) -> (i32, i32) {
    %c0_i32 = arith.constant 0 : i32
    %c0_i32_0 = arith.constant 0 : i32
    %c0_i32_1 = arith.constant 0 : i32
    return %c0_i32, %c0_i32_0 : i32, i32
  }
  func.func @transform_8(%arg0: i32) -> (i32, i32) {
    %c0_i32 = arith.constant 0 : i32
    %c0_i32_0 = arith.constant 0 : i32
    %c0_i32_1 = arith.constant 0 : i32
    return %c0_i32, %c0_i32_0 : i32, i32
  }
  func.func @transform_9(%arg0: i32) -> (i32, i32, i32) {
    %c0_i32 = arith.constant 0 : i32
    %c0_i32_0 = arith.constant 0 : i32
    %c0_i32_1 = arith.constant 0 : i32
    return %arg0, %c0_i32, %c0_i32_0 : i32, i32, i32
  }
}

</mosaic_0001>

<llo_original>
// kernel: tpu_custom_call.1
$region0: #{tpu_custom_call.1}
  #allocation0 [shape = 'u32[]', space=smem, size = 0x4, offset = 0x4, fixed_abs, tag = 'smem constant byte address 0x4 - core index']
  #allocation1 [shape = 'u32[144,128]{1,0:T(1,128)}', space=vmem, size = 0x12000, scoped, tag = 'internal scratch']
  #allocation2 [shape = 'f32[1,1]{1,0:T(1,128)S(6)}', space=smem, size = 0x200, scoped, tag = 'scoped memory for tpu_custom_call.1']
  %s0 = inlined_call_operand.hbm [shape: f32[8,16], index: 0, kind: input, shape index: {}]
  %s1 = inlined_call_operand.vmem [shape: f32[8,4], index: 1, kind: input, shape index: {}]
  %s2 = inlined_call_operand.vmem [shape: f32[16,32], index: 2, kind: input, shape index: {}]
  %s3 = inlined_call_operand.vmem [shape: f32[1,32], index: 3, kind: input, shape index: {}]
  %s4 = inlined_call_operand.hbm [shape: f32[32,32], index: 4, kind: input, shape index: {}]
  %s5 = inlined_call_operand.vmem [shape: f32[4,32], index: 5, kind: input, shape index: {}]
  %s6 = inlined_call_operand.vmem [shape: f32[1,32], index: 6, kind: input, shape index: {}]
  %s7 = inlined_call_operand.vmem [shape: f32[1,32], index: 7, kind: input, shape index: {}]
  %s8 = inlined_call_operand.<no memory space> [shape: f32[1,1], index: 8, kind: input, shape index: {}]
  %s9 = inlined_call_operand.hbm [shape: f32[1,1,8], index: 9, kind: output, shape index: {}]
  %s10 = sld [smem:[#allocation0]]
  $region54: #{tpu_custom_call.1} parent=0
    _
  %s12 = ssub.s32 1, %s10
  %s13 = scalar_select 0, %s12, %s10
  %14 = sst [smem:[#allocation2]] %s8
  $region1: #{tpu_custom_call.1} parent=0
    #allocation3 [shape = 'u8[4096]{0}', space=vmem, size = 0x1000, scoped, tag = 'input window, operand 0, single buffered']
    #allocation4 [shape = 's32[1]{0}', space=sflag, size = 0x4, scoped, tag = 'scoped memory for tpu_custom_call.1']
    #allocation5 [shape = 's32[1]{0}', space=sflag, size = 0x4, scoped, tag = 'scoped memory for tpu_custom_call.1']
    #allocation6 [shape = 'u8[16384]{0}', space=vmem, size = 0x4000, scoped, tag = 'input window, operand 4, single buffered']
    #allocation7 [shape = 's32[1]{0}', space=sflag, size = 0x4, scoped, tag = 'scoped memory for tpu_custom_call.1']
    #allocation8 [shape = 'u8[512]{0}', space=vmem, size = 0x400, scoped, tag = 'output window, operand 0, single buffered']
    %15 = vsyncpa [#allocation4], 0
    %16 = vsyncpa [#allocation7], 0
    %17 = vsyncpa [#allocation5], 0
    // Predicated region
    $region2: #{tpu_custom_call.1} parent=1 // pred_check
      _
    $region3: #{tpu_custom_call.1} parent=1 // pred_check_branch
      %19 = sbr.rel (0) target = $region5
    $region4: #{tpu_custom_call.1} parent=1 // pred_region
      %s21 = ssub.s32 128, 128
      %22 = vsyncadd [#allocation4], %s21
      %s24 = sshll.u32 [#allocation3], 4
      %s25 = int_to_ptr.vmem [resolvable:$true] %s24
      %27 = dma.hbm_to_vmem [thread:$0]  %s0, 128, %s25, [#allocation4]
    $region5: #{tpu_custom_call.1} parent=1 // pred_fallthru
      _
    // Predicated region
    $region6: #{tpu_custom_call.1} parent=1 // pred_check
      _
    $region7: #{tpu_custom_call.1} parent=1 // pred_check_branch
      %29 = sbr.rel (0) target = $region9
    $region8: #{tpu_custom_call.1} parent=1 // pred_region
      _
    $region9: #{tpu_custom_call.1} parent=1 // pred_fallthru
      _
    // Predicated region
    $region10: #{tpu_custom_call.1} parent=1 // pred_check
      _
    $region11: #{tpu_custom_call.1} parent=1 // pred_check_branch
      %31 = sbr.rel (0) target = $region13
    $region12: #{tpu_custom_call.1} parent=1 // pred_region
      _
    $region13: #{tpu_custom_call.1} parent=1 // pred_fallthru
      _
    // Predicated region
    $region14: #{tpu_custom_call.1} parent=1 // pred_check
      _
    $region15: #{tpu_custom_call.1} parent=1 // pred_check_branch
      %33 = sbr.rel (0) target = $region17
    $region16: #{tpu_custom_call.1} parent=1 // pred_region
      _
    $region17: #{tpu_custom_call.1} parent=1 // pred_fallthru
      _
    // Predicated region
    $region18: #{tpu_custom_call.1} parent=1 // pred_check
      _
    $region19: #{tpu_custom_call.1} parent=1 // pred_check_branch
      %35 = sbr.rel (0) target = $region21
    $region20: #{tpu_custom_call.1} parent=1 // pred_region
      %s37 = ssub.s32 512, 512
      %38 = vsyncadd [#allocation7], %s37
      %s39 = sshll.u32 [#allocation6], 4
      %s40 = int_to_ptr.vmem [resolvable:$true] %s39
      %45 = dma.hbm_to_vmem [thread:$0]  %s4, 512, %s40, [#allocation7], 128, 128, 8
    $region21: #{tpu_custom_call.1} parent=1 // pred_fallthru
      _
    // Predicated region
    $region22: #{tpu_custom_call.1} parent=1 // pred_check
      _
    $region23: #{tpu_custom_call.1} parent=1 // pred_check_branch
      %47 = sbr.rel (0) target = $region25
    $region24: #{tpu_custom_call.1} parent=1 // pred_region
      _
    $region25: #{tpu_custom_call.1} parent=1 // pred_fallthru
      _
    // Predicated region
    $region26: #{tpu_custom_call.1} parent=1 // pred_check
      _
    $region27: #{tpu_custom_call.1} parent=1 // pred_check_branch
      %49 = sbr.rel (0) target = $region29
    $region28: #{tpu_custom_call.1} parent=1 // pred_region
      _
    $region29: #{tpu_custom_call.1} parent=1 // pred_fallthru
      _
    // Predicated region
    $region30: #{tpu_custom_call.1} parent=1 // pred_check
      _
    $region31: #{tpu_custom_call.1} parent=1 // pred_check_branch
      %51 = sbr.rel (0) target = $region33
    $region32: #{tpu_custom_call.1} parent=1 // pred_region
      _
    $region33: #{tpu_custom_call.1} parent=1 // pred_fallthru
      _
    // Predicated region
    $region34: #{tpu_custom_call.1} parent=1 // pred_check
      _
    $region35: #{tpu_custom_call.1} parent=1 // pred_check_branch
      %53 = sbr.rel (0) target = $region37
    $region36: #{tpu_custom_call.1} parent=1 // pred_region
      _
    $region37: #{tpu_custom_call.1} parent=1 // pred_fallthru
      _
    // Predicated region
    $region38: #{tpu_custom_call.1} parent=1 // pred_check
      _
    $region39: #{tpu_custom_call.1} parent=1 // pred_check_branch
      %55 = sbr.rel (0) target = $region41
    $region40: #{tpu_custom_call.1} parent=1 // pred_region
      %56 = dma.done [#allocation4], 128
    $region41: #{tpu_custom_call.1} parent=1 // pred_fallthru
      _
    // Predicated region
    $region42: #{tpu_custom_call.1} parent=1 // pred_check
      _
    $region43: #{tpu_custom_call.1} parent=1 // pred_check_branch
      %58 = sbr.rel (0) target = $region45
    $region44: #{tpu_custom_call.1} parent=1 // pred_region
      %59 = dma.done [#allocation7], 512
    $region45: #{tpu_custom_call.1} parent=1 // pred_fallthru
      _
    %v60 = vld [vmem:[#allocation3] sm:$0xff]
    %v61 = vld [vmem:[%s1] sm:$0xff]
    %v62 = vld [vmem:[%s2] sm:$0xff]
    %v63 = vld [vmem:[%s2 + $0x8] sm:$0xff]
    %v64 = vld [vmem:[%s3] sm:$0x1]
    %v66 = vlaneseq
    %v67 = vshrl.u32 %v66, 7
    %v68 = vsub.s32 0, %v67
    %v69 = vrot.slane %v64, %v68
    %vm71 = vcmask 130048
    %v73 = vsel %vm71, %v60, 0
    %75 = vmatprep.subr.mxu0 0.0
    %76 = vmatpush1.msra.mxu0 0.0
    %77 = vmatprep.subr.mxu0 0.0
    %78 = vmatpush1.msra.mxu0 0.0
    %79 = vmatprep.subr.mxu0 0.0
    %80 = vmatpush1.msra.mxu0 0.0
    %81 = vmatprep.subr.mxu0 0.0
    %82 = vmatpush1.msra.mxu0 0.0
    %83 = vmatprep.subr.mxu0 0.0
    %84 = vmatpush1.msra.mxu0 0.0
    %85 = vmatprep.subr.mxu0 0.0
    %86 = vmatpush1.msra.mxu0 0.0
    %87 = vmatprep.subr.mxu0 0.0
    %88 = vmatpush1.msra.mxu0 0.0
    %89 = vmatprep.subr.mxu0 0.0
    %90 = vmatpush1.msra.mxu0 0.0
    %91 = vmatprep.subr.mxu0 0.0
    %92 = vmatpush1.msra.mxu0 0.0
    %93 = vmatprep.subr.mxu0 0.0
    %94 = vmatpush1.msra.mxu0 0.0
    %95 = vmatprep.subr.mxu0 0.0
    %96 = vmatpush1.msra.mxu0 0.0
    %97 = vmatprep.subr.mxu0 0.0
    %98 = vmatpush1.msra.mxu0 0.0
    %99 = vmatprep.subr.mxu0 0.0
    %100 = vmatpush1.msra.mxu0 0.0
    %101 = vmatprep.subr.mxu0 0.0
    %102 = vmatpush1.msra.mxu0 0.0
    %103 = vmatprep.subr.mxu0 0.0
    %104 = vmatpush1.msra.mxu0 %v63
    %105 = vmatprep.subr.mxu0 0.0
    %106 = vmatpush1.msra.mxu0 %v62
    %107 = vmatprep.subr.mxu0 0.0
    %108 = vmatpush2.msra.mxu0 0.0
    %109 = vmatprep.subr.mxu0 0.0
    %110 = vmatpush2.msra.mxu0 0.0
    %111 = vmatprep.subr.mxu0 0.0
    %112 = vmatpush2.msra.mxu0 0.0
    %113 = vmatprep.subr.mxu0 0.0
    %114 = vmatpush2.msra.mxu0 0.0
    %115 = vmatprep.subr.mxu0 0.0
    %116 = vmatpush2.msra.mxu0 0.0
    %117 = vmatprep.subr.mxu0 0.0
    %118 = vmatpush2.msra.mxu0 0.0
    %119 = vmatprep.subr.mxu0 0.0
    %120 = vmatpush2.msra.mxu0 0.0
    %121 = vmatprep.subr.mxu0 0.0
    %122 = vmatpush2.msra.mxu0 0.0
    %123 = vmatprep.subr.mxu0 0.0
    %124 = vmatpush2.msra.mxu0 0.0
    %125 = vmatprep.subr.mxu0 0.0
    %126 = vmatpush2.msra.mxu0 0.0
    %127 = vmatprep.subr.mxu0 0.0
    %128 = vmatpush2.msra.mxu0 0.0
    %129 = vmatprep.subr.mxu0 0.0
    %130 = vmatpush2.msra.mxu0 0.0
    %131 = vmatprep.subr.mxu0 0.0
    %132 = vmatpush2.msra.mxu0 0.0
    %133 = vmatprep.subr.mxu0 0.0
    %134 = vmatpush2.msra.mxu0 0.0
    %135 = vmatprep.subr.mxu0 0.0
    %136 = vmatpush2.msra.mxu0 0.0
    %137 = vmatprep.subr.mxu0 0.0
    %138 = vmatpush2.msra.mxu0 0.0
    %139 = vmatprep.mubr.f32.mxu0 0.0
    %140 = vmatmul.mubr.f32.gmra.mxu0 %v73
    %v141 = vpop.f32.mrf.mxu0
    %v142 = vadd.f32 %v69, %v141
    %v143 = vpop.f32.mrf.mxu0
    %144 = vdwg.mxu0
    %v145 = vmin.f32 %v142, 0.0
    %v146 = vmul.f32 %v145, 1.442695
    %v147 = vpow.pop %v146
    %v148 = vadd.f32 %v147, 1.0
    %v149 = vmul.f32 %v145, 0.5
    %v150 = vtanh.pop %v149
    %v151 = vmul.f32 %v148, %v150
    %vm152 = vcmp.gt.f32.partialorder %v142, 0.0
    %v153 = vsel %vm152, %v142, %v151
    %v154 = vld [vmem:[#allocation6] sm:$0xff]
    %v155 = vld [vmem:[#allocation6 + $0x8] sm:$0xff]
    %v156 = vld [vmem:[#allocation6 + $0x10] sm:$0xff]
    %v157 = vld [vmem:[#allocation6 + $0x18] sm:$0xff]
    %v158 = vld [vmem:[%s5] sm:$0xf]
    %vm159 = vcmask 31744
    %v161 = vsel %vm159, %v61, 0
    %vm163 = vcmask 1043456
    %v165 = vsel %vm163, %v158, 0
    %167 = vmatprep.subr.mxu0 0.0
    %168 = vmatpush1.msra.mxu0 0.0
    %169 = vmatprep.subr.mxu0 0.0
    %170 = vmatpush1.msra.mxu0 0.0
    %171 = vmatprep.subr.mxu0 0.0
    %172 = vmatpush1.msra.mxu0 0.0
    %173 = vmatprep.subr.mxu0 0.0
    %174 = vmatpush1.msra.mxu0 0.0
    %175 = vmatprep.subr.mxu0 0.0
    %176 = vmatpush1.msra.mxu0 0.0
    %177 = vmatprep.subr.mxu0 0.0
    %178 = vmatpush1.msra.mxu0 0.0
    %179 = vmatprep.subr.mxu0 0.0
    %180 = vmatpush1.msra.mxu0 0.0
    %181 = vmatprep.subr.mxu0 0.0
    %182 = vmatpush1.msra.mxu0 0.0
    %183 = vmatprep.subr.mxu0 0.0
    %184 = vmatpush1.msra.mxu0 0.0
    %185 = vmatprep.subr.mxu0 0.0
    %186 = vmatpush1.msra.mxu0 0.0
    %187 = vmatprep.subr.mxu0 0.0
    %188 = vmatpush1.msra.mxu0 0.0
    %189 = vmatprep.subr.mxu0 0.0
    %190 = vmatpush1.msra.mxu0 0.0
    %191 = vmatprep.subr.mxu0 0.0
    %192 = vmatpush1.msra.mxu0 0.0
    %193 = vmatprep.subr.mxu0 0.0
    %194 = vmatpush1.msra.mxu0 0.0
    %195 = vmatprep.subr.mxu0 0.0
    %196 = vmatpush1.msra.mxu0 0.0
    %197 = vmatprep.subr.mxu0 0.0
    %198 = vmatpush1.msra.mxu0 %v165
    %199 = vmatprep.subr.mxu0 0.0
    %200 = vmatpush2.msra.mxu0 0.0
    %201 = vmatprep.subr.mxu0 0.0
    %202 = vmatpush2.msra.mxu0 0.0
    %203 = vmatprep.subr.mxu0 0.0
    %204 = vmatpush2.msra.mxu0 0.0
    %205 = vmatprep.subr.mxu0 0.0
    %206 = vmatpush2.msra.mxu0 0.0
    %207 = vmatprep.subr.mxu0 0.0
    %208 = vmatpush2.msra.mxu0 0.0
    %209 = vmatprep.subr.mxu0 0.0
    %210 = vmatpush2.msra.mxu0 0.0
    %211 = vmatprep.subr.mxu0 0.0
    %212 = vmatpush2.msra.mxu0 0.0
    %213 = vmatprep.subr.mxu0 0.0
    %214 = vmatpush2.msra.mxu0 0.0
    %215 = vmatprep.subr.mxu0 0.0
    %216 = vmatpush2.msra.mxu0 0.0
    %217 = vmatprep.subr.mxu0 0.0
    %218 = vmatpush2.msra.mxu0 0.0
    %219 = vmatprep.subr.mxu0 0.0
    %220 = vmatpush2.msra.mxu0 0.0
    %221 = vmatprep.subr.mxu0 0.0
    %222 = vmatpush2.msra.mxu0 0.0
    %223 = vmatprep.subr.mxu0 0.0
    %224 = vmatpush2.msra.mxu0 0.0
    %225 = vmatprep.subr.mxu0 0.0
    %226 = vmatpush2.msra.mxu0 0.0
    %227 = vmatprep.subr.mxu0 0.0
    %228 = vmatpush2.msra.mxu0 0.0
    %229 = vmatprep.subr.mxu0 0.0
    %230 = vmatpush2.msra.mxu0 0.0
    %231 = vmatprep.mubr.f32.mxu0 0.0
    %232 = vmatmul.mubr.f32.gmra.mxu0 %v161
    %v233 = vpop.f32.mrf.mxu0
    %v234 = vadd.f32 0.0, %v233
    %v235 = vpop.f32.mrf.mxu0
    %236 = vdwg.mxu0
    %vm237 = vcmask 261120
    %v239 = vsel %vm237, %v153, 0
    %241 = vmatprep.subr.mxu0 0.0
    %242 = vmatpush1.msra.mxu0 0.0
    %243 = vmatprep.subr.mxu0 0.0
    %244 = vmatpush1.msra.mxu0 0.0
    %245 = vmatprep.subr.mxu0 0.0
    %246 = vmatpush1.msra.mxu0 0.0
    %247 = vmatprep.subr.mxu0 0.0
    %248 = vmatpush1.msra.mxu0 0.0
    %249 = vmatprep.subr.mxu0 0.0
    %250 = vmatpush1.msra.mxu0 0.0
    %251 = vmatprep.subr.mxu0 0.0
    %252 = vmatpush1.msra.mxu0 0.0
    %253 = vmatprep.subr.mxu0 0.0
    %254 = vmatpush1.msra.mxu0 0.0
    %255 = vmatprep.subr.mxu0 0.0
    %256 = vmatpush1.msra.mxu0 0.0
    %257 = vmatprep.subr.mxu0 0.0
    %258 = vmatpush1.msra.mxu0 0.0
    %259 = vmatprep.subr.mxu0 0.0
    %260 = vmatpush1.msra.mxu0 0.0
    %261 = vmatprep.subr.mxu0 0.0
    %262 = vmatpush1.msra.mxu0 0.0
    %263 = vmatprep.subr.mxu0 0.0
    %264 = vmatpush1.msra.mxu0 0.0
    %265 = vmatprep.subr.mxu0 0.0
    %266 = vmatpush1.msra.mxu0 %v157
    %267 = vmatprep.subr.mxu0 0.0
    %268 = vmatpush1.msra.mxu0 %v156
    %269 = vmatprep.subr.mxu0 0.0
    %270 = vmatpush1.msra.mxu0 %v155
    %271 = vmatprep.subr.mxu0 0.0
    %272 = vmatpush1.msra.mxu0 %v154
    %273 = vmatprep.subr.mxu0 0.0
    %274 = vmatpush2.msra.mxu0 0.0
    %275 = vmatprep.subr.mxu0 0.0
    %276 = vmatpush2.msra.mxu0 0.0
    %277 = vmatprep.subr.mxu0 0.0
    %278 = vmatpush2.msra.mxu0 0.0
    %279 = vmatprep.subr.mxu0 0.0
    %280 = vmatpush2.msra.mxu0 0.0
    %281 = vmatprep.subr.mxu0 0.0
    %282 = vmatpush2.msra.mxu0 0.0
    %283 = vmatprep.subr.mxu0 0.0
    %284 = vmatpush2.msra.mxu0 0.0
    %285 = vmatprep.subr.mxu0 0.0
    %286 = vmatpush2.msra.mxu0 0.0
    %287 = vmatprep.subr.mxu0 0.0
    %288 = vmatpush2.msra.mxu0 0.0
    %289 = vmatprep.subr.mxu0 0.0
    %290 = vmatpush2.msra.mxu0 0.0
    %291 = vmatprep.subr.mxu0 0.0
    %292 = vmatpush2.msra.mxu0 0.0
    %293 = vmatprep.subr.mxu0 0.0
    %294 = vmatpush2.msra.mxu0 0.0
    %295 = vmatprep.subr.mxu0 0.0
    %296 = vmatpush2.msra.mxu0 0.0
    %297 = vmatprep.subr.mxu0 0.0
    %298 = vmatpush2.msra.mxu0 0.0
    %299 = vmatprep.subr.mxu0 0.0
    %300 = vmatpush2.msra.mxu0 0.0
    %301 = vmatprep.subr.mxu0 0.0
    %302 = vmatpush2.msra.mxu0 0.0
    %303 = vmatprep.subr.mxu0 0.0
    %304 = vmatpush2.msra.mxu0 0.0
    %305 = vmatprep.mubr.f32.mxu0 0.0
    %306 = vmatmul.mubr.f32.gmra.mxu0 %v239
    %v307 = vpop.f32.mrf.mxu0
    %v308 = vadd.f32 %v234, %v307
    %v309 = vpop.f32.mrf.mxu0
    %310 = vdwg.mxu0
    %v311 = vld [vmem:[%s6] sm:$0x1]
    %v313 = vlaneseq
    %v314 = vshrl.u32 %v313, 7
    %v315 = vsub.s32 0, %v314
    %v316 = vrot.slane %v311, %v315
    %v318 = vadd.f32 %v308, %v316
    %v319 = vmin.f32 %v318, 0.0
    %v320 = vmul.f32 %v319, 1.442695
    %v321 = vpow.pop %v320
    %v322 = vadd.f32 %v321, 1.0
    %v323 = vmul.f32 %v319, 0.5
    %v324 = vtanh.pop %v323
    %v325 = vmul.f32 %v322, %v324
    %vm326 = vcmp.gt.f32.partialorder %v318, 0.0
    %v327 = vsel %vm326, %v318, %v325
    %v328 = vld [vmem:[%s7] sm:$0x1]
    %s329 = sld [smem:[#allocation2]]
    %v330 = vstv %s329
    %v332 = vsel %vm237, %v328, 0
    %v335 = vsel %vm237, %v327, 0
    %337 = vmatprep.subr.mxu0 0.0
    %338 = vmatpush1.xpose.msra.mxu0 0.0
    %339 = vmatprep.subr.mxu0 0.0
    %340 = vmatpush1.xpose.msra.mxu0 0.0
    %341 = vmatprep.subr.mxu0 0.0
    %342 = vmatpush1.xpose.msra.mxu0 0.0
    %343 = vmatprep.subr.mxu0 0.0
    %344 = vmatpush1.xpose.msra.mxu0 0.0
    %345 = vmatprep.subr.mxu0 0.0
    %346 = vmatpush1.xpose.msra.mxu0 0.0
    %347 = vmatprep.subr.mxu0 0.0
    %348 = vmatpush1.xpose.msra.mxu0 0.0
    %349 = vmatprep.subr.mxu0 0.0
    %350 = vmatpush1.xpose.msra.mxu0 0.0
    %351 = vmatprep.subr.mxu0 0.0
    %352 = vmatpush1.xpose.msra.mxu0 0.0
    %353 = vmatprep.subr.mxu0 0.0
    %354 = vmatpush1.xpose.msra.mxu0 0.0
    %355 = vmatprep.subr.mxu0 0.0
    %356 = vmatpush1.xpose.msra.mxu0 0.0
    %357 = vmatprep.subr.mxu0 0.0
    %358 = vmatpush1.xpose.msra.mxu0 0.0
    %359 = vmatprep.subr.mxu0 0.0
    %360 = vmatpush1.xpose.msra.mxu0 0.0
    %361 = vmatprep.subr.mxu0 0.0
    %362 = vmatpush1.xpose.msra.mxu0 0.0
    %363 = vmatprep.subr.mxu0 0.0
    %364 = vmatpush1.xpose.msra.mxu0 0.0
    %365 = vmatprep.subr.mxu0 0.0
    %366 = vmatpush1.xpose.msra.mxu0 0.0
    %367 = vmatprep.subr.mxu0 0.0
    %368 = vmatpush1.xpose.msra.mxu0 %v335
    %369 = vmatprep.subr.mxu0 0.0
    %370 = vmatpush2.xpose.msra.mxu0 0.0
    %371 = vmatprep.subr.mxu0 0.0
    %372 = vmatpush2.xpose.msra.mxu0 0.0
    %373 = vmatprep.subr.mxu0 0.0
    %374 = vmatpush2.xpose.msra.mxu0 0.0
    %375 = vmatprep.subr.mxu0 0.0
    %376 = vmatpush2.xpose.msra.mxu0 0.0
    %377 = vmatprep.subr.mxu0 0.0
    %378 = vmatpush2.xpose.msra.mxu0 0.0
    %379 = vmatprep.subr.mxu0 0.0
    %380 = vmatpush2.xpose.msra.mxu0 0.0
    %381 = vmatprep.subr.mxu0 0.0
    %382 = vmatpush2.xpose.msra.mxu0 0.0
    %383 = vmatprep.subr.mxu0 0.0
    %384 = vmatpush2.xpose.msra.mxu0 0.0
    %385 = vmatprep.subr.mxu0 0.0
    %386 = vmatpush2.xpose.msra.mxu0 0.0
    %387 = vmatprep.subr.mxu0 0.0
    %388 = vmatpush2.xpose.msra.mxu0 0.0
    %389 = vmatprep.subr.mxu0 0.0
    %390 = vmatpush2.xpose.msra.mxu0 0.0
    %391 = vmatprep.subr.mxu0 0.0
    %392 = vmatpush2.xpose.msra.mxu0 0.0
    %393 = vmatprep.subr.mxu0 0.0
    %394 = vmatpush2.xpose.msra.mxu0 0.0
    %395 = vmatprep.subr.mxu0 0.0
    %396 = vmatpush2.xpose.msra.mxu0 0.0
    %397 = vmatprep.subr.mxu0 0.0
    %398 = vmatpush2.xpose.msra.mxu0 0.0
    %399 = vmatprep.subr.mxu0 0.0
    %400 = vmatpush2.xpose.msra.mxu0 0.0
    %401 = vmatprep.mubr.f32.mxu0 0.0
    %402 = vmatmul.mubr.f32.gmra.mxu0 %v332
    %v403 = vpop.f32.mrf.mxu0
    %v404 = vadd.f32 %v330, %v403
    %v405 = vpop.f32.mrf.mxu0
    %406 = vdwg.mxu0
    %vm407 = vcmask 57344
    %408 = vst.msk [vmem:[#allocation8] sm:$0x1] %vm407, %v404
    // Predicated region
    $region46: #{tpu_custom_call.1} parent=1 // pred_check
      _
    $region47: #{tpu_custom_call.1} parent=1 // pred_check_branch
      %410 = sbr.rel (0) target = $region49
    $region48: #{tpu_custom_call.1} parent=1 // pred_region
      %s412 = ssub.s32 16, 16
      %413 = vsyncadd [#allocation5], %s412
      %s415 = sshll.u32 [#allocation8], 4
      %s416 = int_to_ptr.vmem [resolvable:$true] %s415
      %418 = dma.vmem_to_hbm [thread:$0]  %s416, 16, %s9, [#allocation5]
    $region49: #{tpu_custom_call.1} parent=1 // pred_fallthru
      _
    // Predicated region
    $region50: #{tpu_custom_call.1} parent=1 // pred_check
      _
    $region51: #{tpu_custom_call.1} parent=1 // pred_check_branch
      %420 = sbr.rel (0) target = $region53
    $region52: #{tpu_custom_call.1} parent=1 // pred_region
      %421 = dma.done [#allocation5], 16
    $region53: #{tpu_custom_call.1} parent=1 // pred_fallthru
      _
    %422 = vsyncpa [#allocation4], 1
    %423 = vsyncpa [#allocation7], 1
    %424 = vsyncpa [#allocation5], 1

</llo_original>
